<compile_context>
chip_gen: v7x
topology: tpu7x:2x2x1
jax: 0.10.0
libtpu: 0.0.40
codegen_flags: <defaults>
</compile_context>

<pallas_src>
import functools

import jax
import jax.numpy as jnp
from jax.experimental import pallas as pl
from jax.experimental.pallas import tpu as pltpu


def _cdiv(a, b):
    return -(-a // b)


def _round_up(v, m):
    return ((v + m - 1) // m) * m


def _mlp_kernel(num_layers, x_ref, *refs):
    # refs = (w0_ref, b0_ref, w1_ref, b1_ref, ..., o_ref)
    o_ref = refs[-1]
    params = refs[:-1]
    compute_dtype = params[0].dtype

    # In-kernel downcast of the f32 input tile (free on the VPU, saves a
    # separate wrapper-side cast kernel + HBM round trip).
    h = x_ref[...].astype(compute_dtype)                 # (tile_m, input_dim)
    for i in range(num_layers):
        w = params[2 * i][...]                           # (in_i, out_i) compute dtype
        b = params[2 * i + 1][...]                       # (1, out_i)    f32
        # MXU matmul, f32 accumulation; bias add (+ ReLU) in f32.
        h = jnp.dot(h, w, preferred_element_type=jnp.float32) + b
        if i < num_layers - 1:
            h = jnp.maximum(h, 0.0).astype(compute_dtype)  # back to MXU feed dtype
    o_ref[...] = h.astype(o_ref.dtype)


def _choose_tile_m(m, requested=2048):
    """Row-tile selection.

    - m fits one tile: single grid step (no serial-loop overhead on 1-TC
      v5e/v6e; per-step work here is far too small to justify a forced split).
    - larger m: balanced, 256-aligned tiles (MXU M-step on v6e/v7x, multiple
      of 16 for bf16 sublane packing); each step then amortizes the ~0.35us
      step overhead and v7x's two TensorCores both get meaningful work.
    """
    cap = max(256, _round_up(requested, 256))
    if m <= cap:
        return _round_up(m, 16)
    n_steps = _cdiv(m, cap)
    return _round_up(_cdiv(m, n_steps), 256)


def prepare_mlp_params(weights, biases, compute_dtype=jnp.bfloat16):
    """One-time parameter prep, hoisted out of the per-call hot path.

    nn.Linear weights (out, in) -> (in, out) in the MXU compute dtype;
    biases -> (1, out) f32 rows.
    """
    wts = [jnp.asarray(w).T.astype(compute_dtype) for w in weights]
    bs = [jnp.asarray(b).reshape(1, -1).astype(jnp.float32) for b in biases]
    return wts, bs


def mlp_prediction_head(x, prepared_weights, prepared_biases, *, tile_m=2048):
    """Run the MLP prediction head.

    Args:
      x:                (batch, num_queries, input_dim) float32
      prepared_weights: list of (in_i, out_i) arrays from prepare_mlp_params
      prepared_biases:  list of (1, out_i) f32 arrays from prepare_mlp_params
    Returns:
      (batch, num_queries, output_dim) with x's dtype.
    """
    num_layers = len(prepared_weights)
    batch, queries, input_dim = x.shape
    output_dim = prepared_weights[-1].shape[1]

    m = batch * queries
    x2 = x.reshape(m, input_dim)          # no cast here — done in-kernel

    tm = _choose_tile_m(m, tile_m)
    grid = (_cdiv(m, tm),)

    in_specs = [pl.BlockSpec((tm, input_dim), lambda i: (i, 0))]
    operands = [x2]
    for w, b in zip(prepared_weights, prepared_biases):
        # Constant index_maps: params are DMA'd once and stay VMEM-resident.
        in_specs.append(pl.BlockSpec(w.shape, lambda i: (0, 0)))
        in_specs.append(pl.BlockSpec(b.shape, lambda i: (0, 0)))
        operands.append(w)
        operands.append(b)

    # Unpadded output block: last dim equals the full array dim, so the
    # writeback is one contiguous tile_m*output_dim copy (no pad, no slice).
    out_spec = pl.BlockSpec((tm, output_dim), lambda i: (i, 0))

    # VMEM budget: double-buffered x/out blocks, double-buffered (tiny)
    # params, plus headroom for in-kernel activations; clamped to a range
    # that is safe on v5e/v6e/v7x.
    max_w = max([input_dim] + [int(w.shape[1]) for w in prepared_weights])
    p_item = jnp.dtype(prepared_weights[0].dtype).itemsize
    need = (2 * tm * input_dim * jnp.dtype(x.dtype).itemsize
            + 2 * tm * output_dim * jnp.dtype(x.dtype).itemsize
            + 2 * sum(int(w.size) * jnp.dtype(w.dtype).itemsize
                      for w in prepared_weights)
            + 2 * sum(int(b.size) * 4 for b in prepared_biases)
            + 2 * tm * max_w * (4 + p_item))
    vmem_limit = int(min(max(2 * need, 16 * 1024 * 1024), 32 * 1024 * 1024))

    out = pl.pallas_call(
        functools.partial(_mlp_kernel, num_layers),
        out_shape=jax.ShapeDtypeStruct((m, output_dim), x.dtype),
        grid_spec=pltpu.PrefetchScalarGridSpec(
            num_scalar_prefetch=0,
            grid=grid,
            in_specs=in_specs,
            out_specs=out_spec,
        ),
        compiler_params=pltpu.CompilerParams(
            dimension_semantics=("parallel",),
            vmem_limit_bytes=vmem_limit,
        ),
    )(*operands)

    return out.reshape(batch, queries, output_dim)


def _reference(x, weights, biases, compute_dtype):
    """Pure-JAX reference with the same compute-dtype policy as the kernel."""
    batch, queries, input_dim = x.shape
    h = x.reshape(batch * queries, input_dim).astype(compute_dtype)
    for i, (w, b) in enumerate(zip(weights, biases)):
        wt = jnp.asarray(w).T.astype(compute_dtype)
        h = jnp.dot(h, wt, preferred_element_type=jnp.float32)
        h = h + jnp.asarray(b).reshape(1, -1).astype(jnp.float32)
        if i < len(weights) - 1:
            h = jnp.maximum(h, 0.0).astype(compute_dtype)
    return h.reshape(batch, queries, -1).astype(x.dtype)


if __name__ == "__main__":
    # Module config (small, consistent with the bbox-prediction head usage):
    input_dim = 32
    hidden_dim = 32
    output_dim = 4
    num_layers = 3

    batch = 2
    num_queries = 8

    key = jax.random.PRNGKey(0)
    keys = jax.random.split(key, 1 + 2 * num_layers)

    x = jax.random.normal(keys[0], (batch, num_queries, input_dim), dtype=jnp.float32)

    # Deterministic parameters (nn.Linear layout: weight (out, in), bias (out,))
    dims = [input_dim] + [hidden_dim] * (num_layers - 1) + [output_dim]
    weights, biases = [], []
    for i in range(num_layers):
        n_in, n_out = dims[i], dims[i + 1]
        bound = 1.0 / (n_in ** 0.5)
        w = jax.random.uniform(keys[1 + 2 * i], (n_out, n_in), jnp.float32, -bound, bound)
        b = jax.random.uniform(keys[2 + 2 * i], (n_out,), jnp.float32, -bound, bound)
        weights.append(w)
        biases.append(b)

    # Fast path: bf16 MXU feed, f32 accumulate.
    wts_bf16, bs_bf16 = prepare_mlp_params(weights, biases, jnp.bfloat16)
    out = mlp_prediction_head(x, wts_bf16, bs_bf16)
    out = jax.block_until_ready(out)
    assert out.shape == (batch, num_queries, output_dim)
    ref_bf16 = _reference(x, weights, biases, jnp.bfloat16)
    assert jnp.allclose(out, ref_bf16, atol=1e-3, rtol=1e-3), "bf16 path mismatch"

    # Parity path: f32 everywhere, checked against an f32 reference so bf16
    # quantization error cannot hide a semantic bug.
    wts_f32, bs_f32 = prepare_mlp_params(weights, biases, jnp.float32)
    out_f32 = jax.block_until_ready(mlp_prediction_head(x, wts_f32, bs_f32))
    ref_f32 = _reference(x, weights, biases, jnp.float32)
    assert jnp.allclose(out_f32, ref_f32, atol=1e-4, rtol=1e-4), "f32 parity mismatch"

    print("KERNEL_OK")
</pallas_src>

<mosaic_0001>
module attributes {stable_mosaic.version = 11 : i64} {
  func.func @_mlp_kernel(%arg0: i32, %arg1: memref<16x32xf32, #tpu.memory_space<vmem>>, %arg2: memref<32x32xbf16, #tpu.memory_space<vmem>>, %arg3: memref<1x32xf32, #tpu.memory_space<vmem>>, %arg4: memref<32x32xbf16, #tpu.memory_space<vmem>>, %arg5: memref<1x32xf32, #tpu.memory_space<vmem>>, %arg6: memref<32x4xbf16, #tpu.memory_space<vmem>>, %arg7: memref<1x4xf32, #tpu.memory_space<vmem>>, %arg8: memref<16x4xf32, #tpu.memory_space<vmem>>) attributes {dimension_semantics = [#tpu.dimension_semantics<parallel>], iteration_bounds = array<i64: 1>, scalar_prefetch = 0 : i64, scratch_operands = 0 : i64, tpu.core_type = #tpu.core_type<tc>, window_params = [{transform_indices = @transform_0, window_bounds = array<i64: 16, 32>}, {pipeline_mode = #tpu.pipeline_mode<synchronous>, transform_indices = @transform_1, window_bounds = array<i64: 32, 32>}, {pipeline_mode = #tpu.pipeline_mode<synchronous>, transform_indices = @transform_2, window_bounds = array<i64: 1, 32>}, {pipeline_mode = #tpu.pipeline_mode<synchronous>, transform_indices = @transform_3, window_bounds = array<i64: 32, 32>}, {pipeline_mode = #tpu.pipeline_mode<synchronous>, transform_indices = @transform_4, window_bounds = array<i64: 1, 32>}, {pipeline_mode = #tpu.pipeline_mode<synchronous>, transform_indices = @transform_5, window_bounds = array<i64: 32, 4>}, {pipeline_mode = #tpu.pipeline_mode<synchronous>, transform_indices = @transform_6, window_bounds = array<i64: 1, 4>}, {transform_indices = @transform_7, window_bounds = array<i64: 16, 4>}]} {
    %c0 = arith.constant 0 : index
    %c0_0 = arith.constant 0 : index
    %0 = vector.load %arg1[%c0, %c0_0] : memref<16x32xf32, #tpu.memory_space<vmem>>, vector<16x32xf32>
    %1 = arith.truncf %0 : vector<16x32xf32> to vector<16x32xbf16>
    %c0_1 = arith.constant 0 : index
    %c0_2 = arith.constant 0 : index
    %2 = vector.load %arg2[%c0_1, %c0_2] : memref<32x32xbf16, #tpu.memory_space<vmem>>, vector<32x32xbf16>
    %c0_3 = arith.constant 0 : index
    %c0_4 = arith.constant 0 : index
    %3 = vector.load %arg3[%c0_3, %c0_4] : memref<1x32xf32, #tpu.memory_space<vmem>>, vector<1x32xf32>
    %cst = arith.constant dense<0.000000e+00> : vector<16x32xf32>
    %4 = tpu.matmul %1, %2, %cst {dimension_numbers = #tpu.dot_dimension_numbers<[1], [0], [0], [1], [0, 0, 1, 1], [], []>} : vector<16x32xbf16>, vector<32x32xbf16>, vector<16x32xf32> -> vector<16x32xf32>
    %5 = vector.broadcast %3 : vector<1x32xf32> to vector<16x32xf32>
    %6 = arith.addf %4, %5 : vector<16x32xf32>
    %cst_5 = arith.constant 0.000000e+00 : f32
    %7 = vector.broadcast %cst_5 : f32 to vector<16x32xf32>
    %8 = arith.maximumf %6, %7 : vector<16x32xf32>
    %9 = arith.truncf %8 : vector<16x32xf32> to vector<16x32xbf16>
    %c0_6 = arith.constant 0 : index
    %c0_7 = arith.constant 0 : index
    %10 = vector.load %arg4[%c0_6, %c0_7] : memref<32x32xbf16, #tpu.memory_space<vmem>>, vector<32x32xbf16>
    %c0_8 = arith.constant 0 : index
    %c0_9 = arith.constant 0 : index
    %11 = vector.load %arg5[%c0_8, %c0_9] : memref<1x32xf32, #tpu.memory_space<vmem>>, vector<1x32xf32>
    %cst_10 = arith.constant dense<0.000000e+00> : vector<16x32xf32>
    %12 = tpu.matmul %9, %10, %cst_10 {dimension_numbers = #tpu.dot_dimension_numbers<[1], [0], [0], [1], [0, 0, 1, 1], [], []>} : vector<16x32xbf16>, vector<32x32xbf16>, vector<16x32xf32> -> vector<16x32xf32>
    %13 = vector.broadcast %11 : vector<1x32xf32> to vector<16x32xf32>
    %14 = arith.addf %12, %13 : vector<16x32xf32>
    %cst_11 = arith.constant 0.000000e+00 : f32
    %15 = vector.broadcast %cst_11 : f32 to vector<16x32xf32>
    %16 = arith.maximumf %14, %15 : vector<16x32xf32>
    %17 = arith.truncf %16 : vector<16x32xf32> to vector<16x32xbf16>
    %c0_12 = arith.constant 0 : index
    %c0_13 = arith.constant 0 : index
    %18 = vector.load %arg6[%c0_12, %c0_13] : memref<32x4xbf16, #tpu.memory_space<vmem>>, vector<32x4xbf16>
    %c0_14 = arith.constant 0 : index
    %c0_15 = arith.constant 0 : index
    %19 = vector.load %arg7[%c0_14, %c0_15] : memref<1x4xf32, #tpu.memory_space<vmem>>, vector<1x4xf32>
    %cst_16 = arith.constant dense<0.000000e+00> : vector<16x4xf32>
    %20 = tpu.matmul %17, %18, %cst_16 {dimension_numbers = #tpu.dot_dimension_numbers<[1], [0], [0], [1], [0, 0, 1, 1], [], []>} : vector<16x32xbf16>, vector<32x4xbf16>, vector<16x4xf32> -> vector<16x4xf32>
    %21 = vector.broadcast %19 : vector<1x4xf32> to vector<16x4xf32>
    %22 = arith.addf %20, %21 : vector<16x4xf32>
    %c0_17 = arith.constant 0 : index
    %c0_18 = arith.constant 0 : index
    %23 = vector.load %arg8[%c0_17, %c0_18] : memref<16x4xf32, #tpu.memory_space<vmem>>, vector<16x4xf32>
    tpu.vector_store %arg8[%c0_17, %c0_18], %22 {strides = array<i32>} : memref<16x4xf32, #tpu.memory_space<vmem>>, vector<16x4xf32>,
    return
  }
  func.func @transform_0(%arg0: i32) -> (i32, i32) {
    %c0_i32 = arith.constant 0 : i32
    %c0_i32_0 = arith.constant 0 : i32
    return %arg0, %c0_i32 : i32, i32
  }
  func.func @transform_1(%arg0: i32) -> (i32, i32) {
    %c0_i32 = arith.constant 0 : i32
    %c0_i32_0 = arith.constant 0 : i32
    %c0_i32_1 = arith.constant 0 : i32
    return %c0_i32, %c0_i32_0 : i32, i32
  }
  func.func @transform_2(%arg0: i32) -> (i32, i32) {
    %c0_i32 = arith.constant 0 : i32
    %c0_i32_0 = arith.constant 0 : i32
    %c0_i32_1 = arith.constant 0 : i32
    return %c0_i32, %c0_i32_0 : i32, i32
  }
  func.func @transform_3(%arg0: i32) -> (i32, i32) {
    %c0_i32 = arith.constant 0 : i32
    %c0_i32_0 = arith.constant 0 : i32
    %c0_i32_1 = arith.constant 0 : i32
    return %c0_i32, %c0_i32_0 : i32, i32
  }
  func.func @transform_4(%arg0: i32) -> (i32, i32) {
    %c0_i32 = arith.constant 0 : i32
    %c0_i32_0 = arith.constant 0 : i32
    %c0_i32_1 = arith.constant 0 : i32
    return %c0_i32, %c0_i32_0 : i32, i32
  }
  func.func @transform_5(%arg0: i32) -> (i32, i32) {
    %c0_i32 = arith.constant 0 : i32
    %c0_i32_0 = arith.constant 0 : i32
    %c0_i32_1 = arith.constant 0 : i32
    return %c0_i32, %c0_i32_0 : i32, i32
  }
  func.func @transform_6(%arg0: i32) -> (i32, i32) {
    %c0_i32 = arith.constant 0 : i32
    %c0_i32_0 = arith.constant 0 : i32
    %c0_i32_1 = arith.constant 0 : i32
    return %c0_i32, %c0_i32_0 : i32, i32
  }
  func.func @transform_7(%arg0: i32) -> (i32, i32) {
    %c0_i32 = arith.constant 0 : i32
    %c0_i32_0 = arith.constant 0 : i32
    return %arg0, %c0_i32 : i32, i32
  }
}

</mosaic_0001>

<llo_original>
// kernel: tpu_custom_call.1
$region0: #{tpu_custom_call.1}
  #allocation0 [shape = 'u32[]', space=smem, size = 0x4, offset = 0x4, fixed_abs, tag = 'smem constant byte address 0x4 - core index']
  #allocation1 [shape = 'u32[144,128]{1,0:T(1,128)}', space=vmem, size = 0x12000, scoped, tag = 'internal scratch']
  %s0 = inlined_call_operand.vmem [shape: f32[16,32], index: 0, kind: input, shape index: {}]
  %s1 = inlined_call_operand.hbm [shape: bf16[32,32], index: 1, kind: input, shape index: {}]
  %s2 = inlined_call_operand.vmem [shape: f32[1,32], index: 2, kind: input, shape index: {}]
  %s3 = inlined_call_operand.hbm [shape: bf16[32,32], index: 3, kind: input, shape index: {}]
  %s4 = inlined_call_operand.vmem [shape: f32[1,32], index: 4, kind: input, shape index: {}]
  %s5 = inlined_call_operand.vmem [shape: bf16[32,4], index: 5, kind: input, shape index: {}]
  %s6 = inlined_call_operand.vmem [shape: f32[1,4], index: 6, kind: input, shape index: {}]
  %s7 = inlined_call_operand.vmem [shape: f32[16,4], index: 7, kind: output, shape index: {}]
  %s8 = sld [smem:[#allocation0]]
  $region46: #{tpu_custom_call.1} parent=0
    _
  %s10 = ssub.s32 1, %s8
  %s11 = scalar_select 0, %s10, %s8
  $region1: #{tpu_custom_call.1} parent=0
    #allocation2 [shape = 'u8[8192]{0}', space=vmem, size = 0x2000, scoped, tag = 'input window, operand 1, single buffered']
    #allocation3 [shape = 's32[1]{0}', space=sflag, size = 0x4, scoped, tag = 'scoped memory for tpu_custom_call.1']
    #allocation4 [shape = 'u8[8192]{0}', space=vmem, size = 0x2000, scoped, tag = 'input window, operand 3, single buffered']
    #allocation5 [shape = 's32[1]{0}', space=sflag, size = 0x4, scoped, tag = 'scoped memory for tpu_custom_call.1']
    %12 = vsyncpa [#allocation3], 0
    %13 = vsyncpa [#allocation5], 0
    // Predicated region
    $region2: #{tpu_custom_call.1} parent=1 // pred_check
      _
    $region3: #{tpu_custom_call.1} parent=1 // pred_check_branch
      %15 = sbr.rel (0) target = $region5
    $region4: #{tpu_custom_call.1} parent=1 // pred_region
      _
    $region5: #{tpu_custom_call.1} parent=1 // pred_fallthru
      _
    // Predicated region
    $region6: #{tpu_custom_call.1} parent=1 // pred_check
      _
    $region7: #{tpu_custom_call.1} parent=1 // pred_check_branch
      %17 = sbr.rel (0) target = $region9
    $region8: #{tpu_custom_call.1} parent=1 // pred_region
      %s19 = ssub.s32 256, 256
      %20 = vsyncadd [#allocation3], %s19
      %s21 = sshll.u32 [#allocation2], 4
      %s22 = int_to_ptr.vmem [resolvable:$true] %s21
      %27 = dma.hbm_to_vmem [thread:$0]  %s1, 256, %s22, [#allocation3], 64, 64, 4
    $region9: #{tpu_custom_call.1} parent=1 // pred_fallthru
      _
    // Predicated region
    $region10: #{tpu_custom_call.1} parent=1 // pred_check
      _
    $region11: #{tpu_custom_call.1} parent=1 // pred_check_branch
      %29 = sbr.rel (0) target = $region13
    $region12: #{tpu_custom_call.1} parent=1 // pred_region
      _
    $region13: #{tpu_custom_call.1} parent=1 // pred_fallthru
      _
    // Predicated region
    $region14: #{tpu_custom_call.1} parent=1 // pred_check
      _
    $region15: #{tpu_custom_call.1} parent=1 // pred_check_branch
      %31 = sbr.rel (0) target = $region17
    $region16: #{tpu_custom_call.1} parent=1 // pred_region
      %s33 = ssub.s32 256, 256
      %34 = vsyncadd [#allocation5], %s33
      %s35 = sshll.u32 [#allocation4], 4
      %s36 = int_to_ptr.vmem [resolvable:$true] %s35
      %41 = dma.hbm_to_vmem [thread:$0]  %s3, 256, %s36, [#allocation5], 64, 64, 4
    $region17: #{tpu_custom_call.1} parent=1 // pred_fallthru
      _
    // Predicated region
    $region18: #{tpu_custom_call.1} parent=1 // pred_check
      _
    $region19: #{tpu_custom_call.1} parent=1 // pred_check_branch
      %43 = sbr.rel (0) target = $region21
    $region20: #{tpu_custom_call.1} parent=1 // pred_region
      _
    $region21: #{tpu_custom_call.1} parent=1 // pred_fallthru
      _
    // Predicated region
    $region22: #{tpu_custom_call.1} parent=1 // pred_check
      _
    $region23: #{tpu_custom_call.1} parent=1 // pred_check_branch
      %45 = sbr.rel (0) target = $region25
    $region24: #{tpu_custom_call.1} parent=1 // pred_region
      _
    $region25: #{tpu_custom_call.1} parent=1 // pred_fallthru
      _
    // Predicated region
    $region26: #{tpu_custom_call.1} parent=1 // pred_check
      _
    $region27: #{tpu_custom_call.1} parent=1 // pred_check_branch
      %47 = sbr.rel (0) target = $region29
    $region28: #{tpu_custom_call.1} parent=1 // pred_region
      _
    $region29: #{tpu_custom_call.1} parent=1 // pred_fallthru
      _
    // Predicated region
    $region30: #{tpu_custom_call.1} parent=1 // pred_check
      _
    $region31: #{tpu_custom_call.1} parent=1 // pred_check_branch
      %49 = sbr.rel (0) target = $region33
    $region32: #{tpu_custom_call.1} parent=1 // pred_region
      %50 = dma.done [#allocation3], 256
    $region33: #{tpu_custom_call.1} parent=1 // pred_fallthru
      _
    // Predicated region
    $region34: #{tpu_custom_call.1} parent=1 // pred_check
      _
    $region35: #{tpu_custom_call.1} parent=1 // pred_check_branch
      %52 = sbr.rel (0) target = $region37
    $region36: #{tpu_custom_call.1} parent=1 // pred_region
      %53 = dma.done [#allocation5], 256
    $region37: #{tpu_custom_call.1} parent=1 // pred_fallthru
      _
    %v55 = vld [vmem:[%s0] sm:$0xff]
    %v56 = vld [vmem:[%s0 + $0x8] sm:$0xff]
    %v57 = vpack.c.bf16 %v56, %v55
    %v58 = vld [vmem:[#allocation2] sm:$0xf]
    %v59 = vld [vmem:[#allocation2 + $0x4] sm:$0xf]
    %v60 = vld [vmem:[#allocation2 + $0x8] sm:$0xf]
    %v61 = vld [vmem:[#allocation2 + $0xc] sm:$0xf]
    %v62 = vld [vmem:[%s2] sm:$0x1]
    %v64 = vlaneseq
    %v65 = vshrl.u32 %v64, 7
    %v66 = vsub.s32 0, %v65
    %v67 = vrot.slane %v62, %v66
    %v73 = vunpack.c.l.b16 %v58
    %v74 = vunpack.c.l.b16 %v59
    %v75 = vunpack.c.l.b16 %v60
    %v76 = vunpack.c.l.b16 %v61
    %v77 = vpack.c.b16 %v74, %v73
    %v78 = vpack.c.b16 %v76, %v75
    %vm81 = vcmask 261120
    %v83 = vsel %vm81, %v57, 0
    %85 = vmatprep.subr.bf16.mxu0 0
    %86 = vmatpush1.bf16.msra.mxu0 %v77
    %87 = vmatprep.subr.bf16.mxu0 0
    %88 = vmatpush1.bf16.msra.mxu0 %v78
    %89 = vmatprep.subr.bf16.mxu0 0
    %90 = vmatpush1.bf16.msra.mxu0 0
    %91 = vmatprep.subr.bf16.mxu0 0
    %92 = vmatpush1.bf16.msra.mxu0 0
    %93 = vmatprep.subr.bf16.mxu0 0
    %94 = vmatpush1.bf16.msra.mxu0 0
    %95 = vmatprep.subr.bf16.mxu0 0
    %96 = vmatpush1.bf16.msra.mxu0 0
    %97 = vmatprep.subr.bf16.mxu0 0
    %98 = vmatpush1.bf16.msra.mxu0 0
    %99 = vmatprep.subr.bf16.mxu0 0
    %100 = vmatpush1.bf16.msra.mxu0 0
    %101 = vmatprep.subr.bf16.mxu0 0
    %102 = vmatpush1.bf16.msra.mxu0 0
    %103 = vmatprep.subr.bf16.mxu0 0
    %104 = vmatpush1.bf16.msra.mxu0 0
    %105 = vmatprep.subr.bf16.mxu0 0
    %106 = vmatpush1.bf16.msra.mxu0 0
    %107 = vmatprep.subr.bf16.mxu0 0
    %108 = vmatpush1.bf16.msra.mxu0 0
    %109 = vmatprep.subr.bf16.mxu0 0
    %110 = vmatpush1.bf16.msra.mxu0 0
    %111 = vmatprep.subr.bf16.mxu0 0
    %112 = vmatpush1.bf16.msra.mxu0 0
    %113 = vmatprep.subr.bf16.mxu0 0
    %114 = vmatpush1.bf16.msra.mxu0 0
    %115 = vmatprep.subr.bf16.mxu0 0
    %116 = vmatpush1.bf16.msra.mxu0 0
    %117 = vmatprep.mubr.bf16.mxu0 0
    %118 = vmatmul.mubr.bf16.gmra.mrb[0].mxu0 %v83
    %v119 = vpop.f32.mrb[0].mxu0
    %v120 = vadd.f32 %v67, %v119
    %v121 = vpop.f32.mrb[0].mxu0
    %v122 = vpop.f32.mrb[0].mxu0
    %v123 = vadd.f32 %v67, %v122
    %v124 = vpop.f32.mrb[0].mxu0
    %125 = vdwg.mxu0
    %v126 = vmax.f32 %v120, 0.0
    %v127 = vmax.f32 %v123, 0.0
    %v128 = vpack.c.bf16 %v127, %v126
    %v129 = vld [vmem:[#allocation4] sm:$0xf]
    %v130 = vld [vmem:[#allocation4 + $0x4] sm:$0xf]
    %v131 = vld [vmem:[#allocation4 + $0x8] sm:$0xf]
    %v132 = vld [vmem:[#allocation4 + $0xc] sm:$0xf]
    %v133 = vld [vmem:[%s4] sm:$0x1]
    %v135 = vlaneseq
    %v136 = vshrl.u32 %v135, 7
    %v137 = vsub.s32 0, %v136
    %v138 = vrot.slane %v133, %v137
    %v144 = vunpack.c.l.b16 %v129
    %v145 = vunpack.c.l.b16 %v130
    %v146 = vunpack.c.l.b16 %v131
    %v147 = vunpack.c.l.b16 %v132
    %v148 = vpack.c.b16 %v145, %v144
    %v149 = vpack.c.b16 %v147, %v146
    %v153 = vsel %vm81, %v128, 0
    %155 = vmatprep.subr.bf16.mxu0 0
    %156 = vmatpush1.bf16.msra.mxu0 %v148
    %157 = vmatprep.subr.bf16.mxu0 0
    %158 = vmatpush1.bf16.msra.mxu0 %v149
    %159 = vmatprep.subr.bf16.mxu0 0
    %160 = vmatpush1.bf16.msra.mxu0 0
    %161 = vmatprep.subr.bf16.mxu0 0
    %162 = vmatpush1.bf16.msra.mxu0 0
    %163 = vmatprep.subr.bf16.mxu0 0
    %164 = vmatpush1.bf16.msra.mxu0 0
    %165 = vmatprep.subr.bf16.mxu0 0
    %166 = vmatpush1.bf16.msra.mxu0 0
    %167 = vmatprep.subr.bf16.mxu0 0
    %168 = vmatpush1.bf16.msra.mxu0 0
    %169 = vmatprep.subr.bf16.mxu0 0
    %170 = vmatpush1.bf16.msra.mxu0 0
    %171 = vmatprep.subr.bf16.mxu0 0
    %172 = vmatpush1.bf16.msra.mxu0 0
    %173 = vmatprep.subr.bf16.mxu0 0
    %174 = vmatpush1.bf16.msra.mxu0 0
    %175 = vmatprep.subr.bf16.mxu0 0
    %176 = vmatpush1.bf16.msra.mxu0 0
    %177 = vmatprep.subr.bf16.mxu0 0
    %178 = vmatpush1.bf16.msra.mxu0 0
    %179 = vmatprep.subr.bf16.mxu0 0
    %180 = vmatpush1.bf16.msra.mxu0 0
    %181 = vmatprep.subr.bf16.mxu0 0
    %182 = vmatpush1.bf16.msra.mxu0 0
    %183 = vmatprep.subr.bf16.mxu0 0
    %184 = vmatpush1.bf16.msra.mxu0 0
    %185 = vmatprep.subr.bf16.mxu0 0
    %186 = vmatpush1.bf16.msra.mxu0 0
    %187 = vmatprep.mubr.bf16.mxu0 0
    %188 = vmatmul.mubr.bf16.gmra.mrb[0].mxu0 %v153
    %v189 = vpop.f32.mrb[0].mxu0
    %v190 = vadd.f32 %v138, %v189
    %v191 = vpop.f32.mrb[0].mxu0
    %v192 = vpop.f32.mrb[0].mxu0
    %v193 = vadd.f32 %v138, %v192
    %v194 = vpop.f32.mrb[0].mxu0
    %195 = vdwg.mxu0
    %v196 = vmax.f32 %v190, 0.0
    %v197 = vmax.f32 %v193, 0.0
    %v198 = vpack.c.bf16 %v197, %v196
    %v199 = vld [vmem:[%s5] sm:$0xf]
    %v200 = vld [vmem:[%s5 + $0x4] sm:$0xf]
    %v201 = vld [vmem:[%s5 + $0x8] sm:$0xf]
    %v202 = vld [vmem:[%s5 + $0xc] sm:$0xf]
    %v203 = vld [vmem:[%s6] sm:$0x1]
    %v205 = vlaneseq
    %v206 = vshrl.u32 %v205, 7
    %v207 = vsub.s32 0, %v206
    %v208 = vrot.slane %v203, %v207
    %v214 = vunpack.c.l.b16 %v199
    %v215 = vunpack.c.l.b16 %v200
    %v216 = vunpack.c.l.b16 %v201
    %v217 = vunpack.c.l.b16 %v202
    %v218 = vpack.c.b16 %v215, %v214
    %v219 = vpack.c.b16 %v217, %v216
    %v223 = vsel %vm81, %v198, 0
    %225 = vmatprep.subr.bf16.mxu0 0
    %226 = vmatpush1.bf16.msra.mxu0 %v218
    %227 = vmatprep.subr.bf16.mxu0 0
    %228 = vmatpush1.bf16.msra.mxu0 %v219
    %229 = vmatprep.subr.bf16.mxu0 0
    %230 = vmatpush1.bf16.msra.mxu0 0
    %231 = vmatprep.subr.bf16.mxu0 0
    %232 = vmatpush1.bf16.msra.mxu0 0
    %233 = vmatprep.subr.bf16.mxu0 0
    %234 = vmatpush1.bf16.msra.mxu0 0
    %235 = vmatprep.subr.bf16.mxu0 0
    %236 = vmatpush1.bf16.msra.mxu0 0
    %237 = vmatprep.subr.bf16.mxu0 0
    %238 = vmatpush1.bf16.msra.mxu0 0
    %239 = vmatprep.subr.bf16.mxu0 0
    %240 = vmatpush1.bf16.msra.mxu0 0
    %241 = vmatprep.subr.bf16.mxu0 0
    %242 = vmatpush1.bf16.msra.mxu0 0
    %243 = vmatprep.subr.bf16.mxu0 0
    %244 = vmatpush1.bf16.msra.mxu0 0
    %245 = vmatprep.subr.bf16.mxu0 0
    %246 = vmatpush1.bf16.msra.mxu0 0
    %247 = vmatprep.subr.bf16.mxu0 0
    %248 = vmatpush1.bf16.msra.mxu0 0
    %249 = vmatprep.subr.bf16.mxu0 0
    %250 = vmatpush1.bf16.msra.mxu0 0
    %251 = vmatprep.subr.bf16.mxu0 0
    %252 = vmatpush1.bf16.msra.mxu0 0
    %253 = vmatprep.subr.bf16.mxu0 0
    %254 = vmatpush1.bf16.msra.mxu0 0
    %255 = vmatprep.subr.bf16.mxu0 0
    %256 = vmatpush1.bf16.msra.mxu0 0
    %257 = vmatprep.mubr.bf16.mxu0 0
    %258 = vmatmul.mubr.bf16.gmra.mrb[0].mxu0 %v223
    %v259 = vpop.f32.mrb[0].mxu0
    %v260 = vadd.f32 %v208, %v259
    %v261 = vpop.f32.mrb[0].mxu0
    %v262 = vpop.f32.mrb[0].mxu0
    %v263 = vadd.f32 %v208, %v262
    %v264 = vpop.f32.mrb[0].mxu0
    %265 = vdwg.mxu0
    %vm266 = vcmask 31744
    %267 = vst.msk [vmem:[%s7] sm:$0xff] %vm266, %v260
    %268 = vst.msk [vmem:[%s7 + $0x8] sm:$0xff] %vm266, %v263
    // Predicated region
    $region38: #{tpu_custom_call.1} parent=1 // pred_check
      _
    $region39: #{tpu_custom_call.1} parent=1 // pred_check_branch
      %270 = sbr.rel (0) target = $region41
    $region40: #{tpu_custom_call.1} parent=1 // pred_region
      _
    $region41: #{tpu_custom_call.1} parent=1 // pred_fallthru
      _
    // Predicated region
    $region42: #{tpu_custom_call.1} parent=1 // pred_check
      _
    $region43: #{tpu_custom_call.1} parent=1 // pred_check_branch
      %272 = sbr.rel (0) target = $region45
    $region44: #{tpu_custom_call.1} parent=1 // pred_region
      _
    $region45: #{tpu_custom_call.1} parent=1 // pred_fallthru
      _
    %273 = vsyncpa [#allocation3], 1
    %274 = vsyncpa [#allocation5], 1

</llo_original>
